<compile_context>
chip_gen: v5e
topology: v5e:2x2
jax: 0.10.0
libtpu: 0.0.40
codegen_flags: <defaults>
</compile_context>

<pallas_src>
import math

import jax
import jax.numpy as jnp
from jax.experimental import pallas as pl
from jax.experimental.pallas import tpu as pltpu

B = 2    # batch
N = 8    # sequence length
D = 32   # embed_dim (even)

# Whole-x size below which we take the single-shot, no-grid path.
_SMALL_PATH_BYTES = 2 << 20


def sin_position_embedding(n: int, embed_dim: int) -> jnp.ndarray:
    """JAX port of the PyTorch helper; returns (1, n, embed_dim) float32."""
    assert embed_dim % 2 == 0, f"embed_dim must be even, got {embed_dim}"
    position = jnp.arange(n, dtype=jnp.float32)[:, None]                        # (n, 1)
    div_term = jnp.exp(jnp.arange(0, embed_dim, 2, dtype=jnp.float32)
                       * (-math.log(10000.0) / embed_dim))                      # (d/2,)
    angles = position * div_term                                                # (n, d/2)
    pe = jnp.zeros((n, embed_dim), jnp.float32)
    pe = pe.at[:, 0::2].set(jnp.sin(angles))
    pe = pe.at[:, 1::2].set(jnp.cos(angles))
    return pe[None, :, :]                                                       # (1, n, d)


def _add_pe_kernel(x_ref, pe_ref, out_ref):
    # Elementwise broadcast add; works for both the flat (B, N*D)+(1, N*D)
    # small path and the tiled (1, TN, D)+(1, TN, D) production path.
    out_ref[...] = x_ref[...] + pe_ref[...]


def sin_position_embeddings_forward(x: jnp.ndarray, pe: jnp.ndarray,
                                    *, block_rows: int = 512) -> jnp.ndarray:
    """Forward pass of SinPositionEmbeddings: x + pe[:, :x.shape[1]].

    x:  (B, Nx, D) float32
    pe: (1, Npe, D) float32 precomputed buffer, Nx <= Npe
    """
    bx, nx, dx = x.shape
    assert dx == pe.shape[-1], (
        f"Embedding dim mismatch: x has {dx}, expected {pe.shape[-1]}")
    assert nx <= pe.shape[1], (
        f"Sequence length {nx} exceeds PE table length {pe.shape[1]}")
    pe_slice = pe[:, :nx, :]

    x_bytes = x.size * x.dtype.itemsize
    if x_bytes <= _SMALL_PATH_BYTES:
        # ---- Small-shape path: single invocation, no grid, lane-dense flatten. ----
        x_flat = x.reshape(bx, nx * dx)
        pe_flat = pe_slice.reshape(1, nx * dx)
        out_flat = pl.pallas_call(
            _add_pe_kernel,
            out_shape=jax.ShapeDtypeStruct((bx, nx * dx), x.dtype),
            in_specs=[
                pl.BlockSpec(memory_space=pltpu.MemorySpace.VMEM),
                pl.BlockSpec(memory_space=pltpu.MemorySpace.VMEM),
            ],
            out_specs=pl.BlockSpec(memory_space=pltpu.MemorySpace.VMEM),
            input_output_aliases={0: 0},   # donate x's buffer as the output
        )(x_flat, pe_flat)
        return out_flat.reshape(bx, nx, dx)

    # ---- Production path: row-tiled, D (lane dim) kept intact. ----
    tn = min(block_rows, nx)
    tn = max(8, (tn // 8) * 8)                 # sublane-aligned row tile
    n_row_tiles = pl.cdiv(nx, tn)
    grid = (n_row_tiles, bx)                   # batch innermost -> pe block resident

    block_bytes = tn * dx * x.dtype.itemsize
    # x, pe, out blocks, each double-buffered, plus headroom; stay within v7x budget.
    vmem_needed = 6 * block_bytes + (4 << 20)
    vmem_limit = min(max(vmem_needed, 32 << 20), 100 << 20)

    out = pl.pallas_call(
        _add_pe_kernel,
        out_shape=jax.ShapeDtypeStruct((bx, nx, dx), x.dtype),
        grid=grid,
        in_specs=[
            pl.BlockSpec((1, tn, dx), lambda r, b: (b, r, 0)),
            pl.BlockSpec((1, tn, dx), lambda r, b: (0, r, 0)),   # independent of batch
        ],
        out_specs=pl.BlockSpec((1, tn, dx), lambda r, b: (b, r, 0)),
        input_output_aliases={0: 0},
        compiler_params=pltpu.CompilerParams(
            # Row tiles shard across v7x's two TensorCores; batch stays sequential
            # (innermost) so the pe block is reused without re-DMA.
            dimension_semantics=("parallel", "arbitrary"),
            vmem_limit_bytes=vmem_limit,
        ),
    )(x, pe_slice)
    return out


if __name__ == "__main__":
    key = jax.random.PRNGKey(0)
    x = jax.random.normal(key, (B, N, D), jnp.float32)
    pe = sin_position_embedding(N, D)   # precomputed once, like register_buffer

    # Reference computed first (mirrors the PyTorch forward exactly).
    ref = x + pe[:, :N]

    out = sin_position_embeddings_forward(x, pe)
    out = jax.block_until_ready(out)

    assert out.shape == (B, N, D), out.shape
    assert jnp.all(jnp.isfinite(out))
    assert jnp.allclose(out, ref, atol=1e-6, rtol=1e-6)
    print("KERNEL_OK")
</pallas_src>

<mosaic_0001>
module attributes {stable_mosaic.version = 11 : i64} {
  func.func @_add_pe_kernel(%arg0: memref<2x256xf32, #tpu.memory_space<vmem>>, %arg1: memref<1x256xf32, #tpu.memory_space<vmem>>, %arg2: memref<2x256xf32, #tpu.memory_space<vmem>>) attributes {dimension_semantics = [], scalar_prefetch = 0 : i64, scratch_operands = 0 : i64, tpu.core_type = #tpu.core_type<tc>} {
    %c0 = arith.constant 0 : index
    %c0_0 = arith.constant 0 : index
    %0 = vector.load %arg0[%c0, %c0_0] : memref<2x256xf32, #tpu.memory_space<vmem>>, vector<2x256xf32>
    %c0_1 = arith.constant 0 : index
    %c0_2 = arith.constant 0 : index
    %1 = vector.load %arg1[%c0_1, %c0_2] : memref<1x256xf32, #tpu.memory_space<vmem>>, vector<1x256xf32>
    %2 = vector.broadcast %1 : vector<1x256xf32> to vector<2x256xf32>
    %3 = arith.addf %0, %2 : vector<2x256xf32>
    %c0_3 = arith.constant 0 : index
    %c0_4 = arith.constant 0 : index
    %4 = vector.load %arg2[%c0_3, %c0_4] : memref<2x256xf32, #tpu.memory_space<vmem>>, vector<2x256xf32>
    tpu.vector_store %arg2[%c0_3, %c0_4], %3 {strides = array<i32>} : memref<2x256xf32, #tpu.memory_space<vmem>>, vector<2x256xf32>,
    return
  }
}

</mosaic_0001>

<llo_original>
// kernel: tpu_custom_call.1
$region0: #{tpu_custom_call.1}
  #allocation0 [shape = 'u32[]', space=smem, size = 0x4, offset = 0x4, fixed_abs, tag = 'smem constant byte address 0x4 - core index']
  #allocation1 [shape = 'u32[72,128]{1,0:T(1,128)}', space=vmem, size = 0x9000, scoped, tag = 'internal scratch']
  %s0 = inlined_call_operand.hbm [shape: f32[2,256], index: 0, kind: input, shape index: {}, may-alias: {0,2}]
  %s1 = inlined_call_operand.vmem [shape: f32[1,256], index: 1, kind: input, shape index: {}]
  %s2 = inlined_call_operand.hbm [shape: f32[2,256], index: 2, kind: output, shape index: {}, may-alias: {0,2}]
  %s3 = sld [smem:[#allocation0]]
  $region22: #{tpu_custom_call.1} parent=0
    _
  %s5 = ssub.s32 1, %s3
  %s6 = scalar_select 0, %s5, %s3
  $region1: #{tpu_custom_call.1} parent=0
    #allocation2 [shape = 'u8[2048]{0}', space=vmem, size = 0x800, scoped, tag = 'input window, operand 0, single buffered']
    #allocation3 [shape = 's32[1]{0}', space=sflag, size = 0x4, scoped, tag = 'scoped memory for tpu_custom_call.1']
    #allocation4 [shape = 's32[1]{0}', space=sflag, size = 0x4, scoped, tag = 'scoped memory for tpu_custom_call.1']
    #allocation5 [shape = 'u8[2048]{0}', space=vmem, size = 0x800, scoped, tag = 'output window, operand 0, single buffered']
    %7 = vsyncpa [#allocation3], 0
    %8 = vsyncpa [#allocation4], 0
    // Predicated region
    $region2: #{tpu_custom_call.1} parent=1 // pred_check
      _
    $region3: #{tpu_custom_call.1} parent=1 // pred_check_branch
      %10 = sbr.rel (0) target = $region5
    $region4: #{tpu_custom_call.1} parent=1 // pred_region
      %12 = vsyncadd [#allocation3], 0
      %s14 = sshll.u32 %s0, 4
      %s15 = int_to_ptr.hbm [resolvable:$true] %s14
      %s16 = sshll.u32 [#allocation2], 4
      %s17 = int_to_ptr.vmem [resolvable:$true] %s16
      %19 = dma.hbm_to_vmem [thread:$0]  %s15, 64, %s17, [#allocation3]
    $region5: #{tpu_custom_call.1} parent=1 // pred_fallthru
      _
    // Predicated region
    $region6: #{tpu_custom_call.1} parent=1 // pred_check
      _
    $region7: #{tpu_custom_call.1} parent=1 // pred_check_branch
      %21 = sbr.rel (0) target = $region9
    $region8: #{tpu_custom_call.1} parent=1 // pred_region
      _
    $region9: #{tpu_custom_call.1} parent=1 // pred_fallthru
      _
    // Predicated region
    $region10: #{tpu_custom_call.1} parent=1 // pred_check
      _
    $region11: #{tpu_custom_call.1} parent=1 // pred_check_branch
      %23 = sbr.rel (0) target = $region13
    $region12: #{tpu_custom_call.1} parent=1 // pred_region
      %25 = dma.done [#allocation3], 64
    $region13: #{tpu_custom_call.1} parent=1 // pred_fallthru
      _
    %v26 = vld [vmem:[#allocation2] sm:$0xf]
    %v27 = vld [vmem:[%s1] sm:$0x3]
    %v29 = vperm.slane %v27, 0
    %v30 = vperm.slane %v27, 1
    %v31 = vrot.slane %v30, 6
    %vm32 = vcmask 1041408
    %v33 = vsel %vm32, %v29, %v31
    %v35 = vadd.f32 %v26, %v33
    %36 = vst [vmem:[#allocation5] sm:$0xf] %v35
    // Predicated region
    $region14: #{tpu_custom_call.1} parent=1 // pred_check
      _
    $region15: #{tpu_custom_call.1} parent=1 // pred_check_branch
      %38 = sbr.rel (0) target = $region17
    $region16: #{tpu_custom_call.1} parent=1 // pred_region
      %40 = vsyncadd [#allocation4], 0
      %s42 = sshll.u32 [#allocation5], 4
      %s43 = int_to_ptr.vmem [resolvable:$true] %s42
      %s44 = sshll.u32 %s2, 4
      %s45 = int_to_ptr.hbm [resolvable:$true] %s44
      %47 = dma.vmem_to_hbm [thread:$0]  %s43, 64, %s45, [#allocation4]
    $region17: #{tpu_custom_call.1} parent=1 // pred_fallthru
      _
    // Predicated region
    $region18: #{tpu_custom_call.1} parent=1 // pred_check
      _
    $region19: #{tpu_custom_call.1} parent=1 // pred_check_branch
      %49 = sbr.rel (0) target = $region21
    $region20: #{tpu_custom_call.1} parent=1 // pred_region
      %51 = dma.done [#allocation4], 64
    $region21: #{tpu_custom_call.1} parent=1 // pred_fallthru
      _
    %52 = vsyncpa [#allocation3], 1
    %53 = vsyncpa [#allocation4], 1

</llo_original>
